<compile_context>
chip_gen: v6e
topology: v6e:2x2x1
jax: 0.10.0
libtpu: 0.0.40
codegen_flags: <defaults>
</compile_context>

<pallas_src>
import functools

import jax
import jax.numpy as jnp
from jax.experimental import pallas as pl
from jax.experimental.pallas import tpu as pltpu


# --------------------------------------------------------------------------- #
# Kernels
# --------------------------------------------------------------------------- #
def _zero_mul_kernel(x_ref, o_ref):
    # Elementwise multiply by 0.0 (NOT a constant fill): preserves NaN/Inf ->
    # NaN propagation, exactly matching torch `.mul(0.0)`.  The vmul itself is
    # free VALU slack under the HBM bound.
    o_ref[...] = x_ref[...] * jnp.asarray(0.0, dtype=x_ref.dtype)


def _zero_fill_kernel(o_ref):
    # Write-only fill (no input read): use when NaN/Inf propagation is not
    # required -- halves HBM bytes moved.
    o_ref[...] = jnp.zeros(o_ref.shape, o_ref.dtype)


# --------------------------------------------------------------------------- #
# Tiling helpers
# --------------------------------------------------------------------------- #
def _round_up(x: int, m: int) -> int:
    return ((x + m - 1) // m) * m


def _sublane(itemsize: int) -> int:
    # Sublane multiple per dtype: 8 (f32), 16 (bf16/f16), 32 (int8/fp8).
    return max(8, 32 // itemsize)


@functools.lru_cache(maxsize=None)
def _generation_params():
    """Returns (target block bytes, vmem_limit_bytes or None) per generation."""
    try:
        kind = jax.devices()[0].device_kind.lower()
    except Exception:
        kind = ""
    if "v7" in kind or "7x" in kind:
        # v7x: ~3.2 TB/s HBM makes the ~0.35us/step fixed overhead significant;
        # use 8 MiB blocks (4 live buffers = 32 MiB) and raise the scoped-VMEM
        # limit explicitly (physical VMEM is 64 MiB/TC).
        return 8 * 1024 * 1024, 48 * 1024 * 1024
    if "v6" in kind:
        # v6e: 4 MiB blocks -> 16 MiB of live buffers, fits the 32 MiB default
        # scoped VMEM without any flag.
        return 4 * 1024 * 1024, None
    # v5e (16 MiB default scoped VMEM) and unknown chips: stay conservative.
    return 2 * 1024 * 1024, None


def _lane_dense_shape(total: int):
    """Factor `total` as (rows, L) with L a large multiple of 128, if possible."""
    for lanes in (4096, 2048, 1024, 512, 256, 128):
        if total % lanes == 0:
            return total // lanes, lanes
    return None


def _pick_tile_rows(rows: int, lanes: int, itemsize: int, target_bytes: int) -> int:
    sub = _sublane(itemsize)
    row_bytes = lanes * itemsize
    tile_r = max(sub, (target_bytes // row_bytes) // sub * sub)
    if tile_r < rows:
        return tile_r
    # Whole slab fits a single target-size block.  If it is big enough to
    # matter, split into ~4 grid steps so the megacore "parallel" split and the
    # double-buffered pipeline engage (a grid of 1 idles one v7x TensorCore and
    # serializes DMA-in / compute / DMA-out).
    if rows * row_bytes >= (1 << 20) and rows >= 4 * sub:
        return max(sub, _round_up((rows + 3) // 4, sub))
    return rows


# --------------------------------------------------------------------------- #
# pallas_call wrapper on a lane-dense 2D slab
# --------------------------------------------------------------------------- #
def _zero_2d(x2d: jax.Array, *, preserve_nan: bool, donate: bool) -> jax.Array:
    rows, lanes = x2d.shape
    itemsize = jnp.dtype(x2d.dtype).itemsize
    target_bytes, vmem_limit = _generation_params()
    tile_r = _pick_tile_rows(rows, lanes, itemsize, target_bytes)
    grid = (pl.cdiv(rows, tile_r),)
    total = rows * lanes

    cp_kwargs = dict(dimension_semantics=("parallel",))
    if vmem_limit is not None:
        cp_kwargs["vmem_limit_bytes"] = vmem_limit
    compiler_params = pltpu.CompilerParams(**cp_kwargs)

    out_shape = jax.ShapeDtypeStruct((rows, lanes), x2d.dtype)
    block = pl.BlockSpec((tile_r, lanes), lambda i: (i, 0))

    if preserve_nan:
        return pl.pallas_call(
            _zero_mul_kernel,
            out_shape=out_shape,
            grid=grid,
            in_specs=[block],
            out_specs=block,
            compiler_params=compiler_params,
            input_output_aliases=({0: 0} if donate else {}),
            cost_estimate=pl.CostEstimate(
                flops=total,
                transcendentals=0,
                bytes_accessed=2 * total * itemsize),
        )(x2d)

    # Write-only fast path: no in_specs, no input read.
    return pl.pallas_call(
        _zero_fill_kernel,
        out_shape=out_shape,
        grid=grid,
        in_specs=[],
        out_specs=block,
        compiler_params=compiler_params,
        cost_estimate=pl.CostEstimate(
            flops=0,
            transcendentals=0,
            bytes_accessed=total * itemsize),
    )()


# --------------------------------------------------------------------------- #
# Public op
# --------------------------------------------------------------------------- #
def zero_op(x: jax.Array, stride: int, *,
            preserve_nan_semantics: bool = True,
            donate: bool = False) -> jax.Array:
    """Pallas equivalent of Zero(stride).forward(x).  x is NCHW."""
    if stride != 1:
        # TODO(synk): fold the ::stride subsample into the kernel DMA; the
        # W-dim (lane) strided read is not efficiently expressible on TPU, so
        # the spatial subsample stays as an XLA slice feeding the kernel.
        x = x[:, :, ::stride, ::stride]

    out_shape = x.shape
    total = int(x.size)
    itemsize = jnp.dtype(x.dtype).itemsize

    rows_lanes = _lane_dense_shape(total)
    pad = 0
    if rows_lanes is not None:
        x2d = x.reshape(rows_lanes)  # free contiguous reshape -> lane-dense
    else:
        # Pad the flattened tensor to a multiple of (sublane * 512 lanes) so
        # stores are full-lane unmasked vst, then slice the pad back off.
        sub = _sublane(itemsize)
        lanes = 512
        chunk = sub * lanes
        padded = _round_up(total, chunk)
        pad = padded - total
        x2d = jnp.pad(x.reshape(-1), (0, pad)).reshape(padded // lanes, lanes)

    donate_eff = donate and preserve_nan_semantics and pad == 0
    out2d = _zero_2d(x2d, preserve_nan=preserve_nan_semantics, donate=donate_eff)

    out_flat = out2d.reshape(-1)
    if pad:
        out_flat = out_flat[:total]
    return out_flat.reshape(out_shape)


class Zero:
    """Mirror of the torch nn.Module: Zero(stride)(x)."""

    def __init__(self, stride: int):
        self.stride = stride

    def __call__(self, x: jax.Array, **kwargs) -> jax.Array:
        return zero_op(x, self.stride, **kwargs)


# --------------------------------------------------------------------------- #
# Self-test
# --------------------------------------------------------------------------- #
if __name__ == "__main__":
    key = jax.random.PRNGKey(0)
    x = jax.random.normal(key, (2, 4, 16, 16), dtype=jnp.float32)

    # stride = 1
    y1 = jax.block_until_ready(zero_op(x, 1))
    assert y1.shape == (2, 4, 16, 16) and y1.dtype == x.dtype
    assert jnp.all(y1 == 0.0)

    # stride = 2 (strided spatial subsample, then mul by 0)
    y2 = jax.block_until_ready(zero_op(x, 2))
    assert y2.shape == (2, 4, 8, 8)
    assert jnp.all(y2 == 0.0)

    # NaN/Inf propagation matches torch .mul(0.0): NaN*0 = NaN, Inf*0 = NaN.
    xn = x.at[0, 0, 0, 0].set(jnp.nan).at[0, 0, 0, 2].set(jnp.inf)
    y3 = jax.block_until_ready(zero_op(xn, 1))
    assert bool(jnp.isnan(y3[0, 0, 0, 0])) and bool(jnp.isnan(y3[0, 0, 0, 2]))

    # Non-128-divisible total exercises the padded lane-dense fallback.
    xo = jax.random.normal(key, (2, 3, 7, 7), dtype=jnp.float32)
    y4 = jax.block_until_ready(zero_op(xo, 1))
    assert y4.shape == (2, 3, 7, 7)
    assert jnp.all(y4 == 0.0)

    # bf16 path (different sublane packing).
    xb = x.astype(jnp.bfloat16)
    y5 = jax.block_until_ready(zero_op(xb, 1))
    assert y5.dtype == jnp.bfloat16 and jnp.all(y5 == 0)

    # Write-only fast path (drops the input read; NaN propagation not kept).
    y6 = jax.block_until_ready(zero_op(x, 1, preserve_nan_semantics=False))
    assert y6.shape == x.shape and jnp.all(y6 == 0.0)

    # Donated-buffer path (output aliases the input HBM buffer).
    xd = x * 1.0
    y7 = jax.block_until_ready(
        jax.jit(lambda a: zero_op(a, 1, donate=True), donate_argnums=0)(xd))
    assert y7.shape == x.shape and jnp.all(y7 == 0.0)

    # Module-style wrapper mirroring torch nn.Module usage.
    y8 = jax.block_until_ready(Zero(stride=2)(x))
    assert y8.shape == (2, 4, 8, 8) and jnp.all(y8 == 0.0)

    print("KERNEL_OK")
</pallas_src>

<mosaic_0001>
module attributes {stable_mosaic.version = 11 : i64} {
  func.func @_zero_mul_kernel(%arg0: i32, %arg1: memref<1x2048xf32, #tpu.memory_space<vmem>>, %arg2: memref<1x2048xf32, #tpu.memory_space<vmem>>) attributes {dimension_semantics = [#tpu.dimension_semantics<parallel>], iteration_bounds = array<i64: 1>, scalar_prefetch = 0 : i64, scratch_operands = 0 : i64, tpu.core_type = #tpu.core_type<tc>, window_params = [{transform_indices = @transform_0, window_bounds = array<i64: 1, 2048>}, {transform_indices = @transform_1, window_bounds = array<i64: 1, 2048>}]} {
    %c0 = arith.constant 0 : index
    %c0_0 = arith.constant 0 : index
    %0 = vector.load %arg1[%c0, %c0_0] : memref<1x2048xf32, #tpu.memory_space<vmem>>, vector<1x2048xf32>
    %cst = arith.constant 0.000000e+00 : f32
    %1 = vector.broadcast %cst : f32 to vector<1x2048xf32>
    %2 = arith.mulf %0, %1 : vector<1x2048xf32>
    %c0_1 = arith.constant 0 : index
    %c0_2 = arith.constant 0 : index
    %3 = vector.load %arg2[%c0_1, %c0_2] : memref<1x2048xf32, #tpu.memory_space<vmem>>, vector<1x2048xf32>
    tpu.vector_store %arg2[%c0_1, %c0_2], %2 {strides = array<i32>} : memref<1x2048xf32, #tpu.memory_space<vmem>>, vector<1x2048xf32>,
    return
  }
  func.func @transform_0(%arg0: i32) -> (i32, i32) {
    %c0_i32 = arith.constant 0 : i32
    %c0_i32_0 = arith.constant 0 : i32
    return %arg0, %c0_i32 : i32, i32
  }
  func.func @transform_1(%arg0: i32) -> (i32, i32) {
    %c0_i32 = arith.constant 0 : i32
    %c0_i32_0 = arith.constant 0 : i32
    return %arg0, %c0_i32 : i32, i32
  }
}

</mosaic_0001>

<llo_original>
// kernel: tpu_custom_call.1
$region0: #{tpu_custom_call.1}
  #allocation0 [shape = 'u32[]', space=smem, size = 0x4, offset = 0x4, fixed_abs, tag = 'smem constant byte address 0x4 - core index']
  #allocation1 [shape = 'u32[144,128]{1,0:T(1,128)}', space=vmem, size = 0x12000, scoped, tag = 'internal scratch']
  %s0 = inlined_call_operand.hbm [shape: f32[1,2048], index: 0, kind: input, shape index: {}]
  %s1 = inlined_call_operand.hbm [shape: f32[1,2048], index: 1, kind: output, shape index: {}]
  %s2 = sld [smem:[#allocation0]]
  $region18: #{tpu_custom_call.1} parent=0
    _
  %s4 = ssub.s32 1, %s2
  %s5 = scalar_select 0, %s4, %s2
  $region1: #{tpu_custom_call.1} parent=0
    #allocation2 [shape = 'u8[8192]{0}', space=vmem, size = 0x2000, scoped, tag = 'input window, operand 0, single buffered']
    #allocation3 [shape = 's32[1]{0}', space=sflag, size = 0x4, scoped, tag = 'scoped memory for tpu_custom_call.1']
    #allocation4 [shape = 's32[1]{0}', space=sflag, size = 0x4, scoped, tag = 'scoped memory for tpu_custom_call.1']
    #allocation5 [shape = 'u8[8192]{0}', space=vmem, size = 0x2000, scoped, tag = 'output window, operand 0, single buffered']
    %6 = vsyncpa [#allocation3], 0
    %7 = vsyncpa [#allocation4], 0
    // Predicated region
    $region2: #{tpu_custom_call.1} parent=1 // pred_check
      _
    $region3: #{tpu_custom_call.1} parent=1 // pred_check_branch
      %9 = sbr.rel (0) target = $region5
    $region4: #{tpu_custom_call.1} parent=1 // pred_region
      %s11 = ssub.s32 256, 256
      %12 = vsyncadd [#allocation3], %s11
      %s14 = sshll.u32 [#allocation2], 4
      %s15 = int_to_ptr.vmem [resolvable:$true] %s14
      %17 = dma.hbm_to_vmem [thread:$0]  %s0, 256, %s15, [#allocation3]
    $region5: #{tpu_custom_call.1} parent=1 // pred_fallthru
      _
    // Predicated region
    $region6: #{tpu_custom_call.1} parent=1 // pred_check
      _
    $region7: #{tpu_custom_call.1} parent=1 // pred_check_branch
      %19 = sbr.rel (0) target = $region9
    $region8: #{tpu_custom_call.1} parent=1 // pred_region
      %20 = dma.done [#allocation3], 256
    $region9: #{tpu_custom_call.1} parent=1 // pred_fallthru
      _
    %v21 = vld [vmem:[#allocation2] sm:$0xff]
    %v22 = vld [vmem:[#allocation2 + $0x8] sm:$0xff]
    %v23 = vmul.f32 %v21, 0.0
    %v24 = vmul.f32 %v22, 0.0
    %25 = vst [vmem:[#allocation5] sm:$0xff] %v23
    %26 = vst [vmem:[#allocation5 + $0x8] sm:$0xff] %v24
    // Predicated region
    $region10: #{tpu_custom_call.1} parent=1 // pred_check
      _
    $region11: #{tpu_custom_call.1} parent=1 // pred_check_branch
      %28 = sbr.rel (0) target = $region13
    $region12: #{tpu_custom_call.1} parent=1 // pred_region
      %s30 = ssub.s32 256, 256
      %31 = vsyncadd [#allocation4], %s30
      %s33 = sshll.u32 [#allocation5], 4
      %s34 = int_to_ptr.vmem [resolvable:$true] %s33
      %36 = dma.vmem_to_hbm [thread:$0]  %s34, 256, %s1, [#allocation4]
    $region13: #{tpu_custom_call.1} parent=1 // pred_fallthru
      _
    // Predicated region
    $region14: #{tpu_custom_call.1} parent=1 // pred_check
      _
    $region15: #{tpu_custom_call.1} parent=1 // pred_check_branch
      %38 = sbr.rel (0) target = $region17
    $region16: #{tpu_custom_call.1} parent=1 // pred_region
      %39 = dma.done [#allocation4], 256
    $region17: #{tpu_custom_call.1} parent=1 // pred_fallthru
      _
    %40 = vsyncpa [#allocation3], 1
    %41 = vsyncpa [#allocation4], 1

</llo_original>
